<compile_context>
chip_gen: v7x
topology: tpu7x:2x2x1
jax: 0.10.0
libtpu: 0.0.40
codegen_flags: <defaults>
</compile_context>

<pallas_src>
import jax
import jax.numpy as jnp
import numpy as np
from jax.experimental import pallas as pl
from jax.experimental.pallas import tpu as pltpu

# ---- problem sizes (consistent with the GAN model: input = max_length*vocab) ----
BATCH       = 2
MAX_LENGTH  = 8
VOCAB_SIZE  = 16
INPUT_SIZE  = MAX_LENGTH * VOCAB_SIZE   # 128
HID1, HID2, HID3 = 128, 256, 128
NEG_SLOPE   = 0.2
TM          = 128                        # batch tile for the gridded (large-batch) path


def _leaky(h):
    # LeakyReLU(0.2) in f32 on the VPU.
    return jnp.where(h > 0, h, NEG_SLOPE * h)


def critic_kernel(x_ref, w1_ref, b1_ref, w2_ref, b2_ref, w3_ref, b3_ref,
                  w4_ref, b4_ref, out_ref):
    # Cast the f32 input tile to bf16 in-kernel (single VPU op); every dot
    # accumulates in f32 on the MXU.
    x = x_ref[...].astype(jnp.bfloat16)

    h = jnp.dot(x, w1_ref[...], preferred_element_type=jnp.float32) + b1_ref[...]
    h = _leaky(h)
    # TODO(synk): training-mode Dropout(0.3) not implemented (identity here).

    h = jnp.dot(h.astype(jnp.bfloat16), w2_ref[...],
                preferred_element_type=jnp.float32) + b2_ref[...]
    h = _leaky(h)

    h = jnp.dot(h.astype(jnp.bfloat16), w3_ref[...],
                preferred_element_type=jnp.float32) + b3_ref[...]
    h = _leaky(h)
    # Dropout(0.3): identity at inference.

    # Final Linear(128 -> 1): VPU multiply + lane reduce instead of an N=1 MXU
    # pass; w4 is the PyTorch weight row (1, 128), b4 is an SMEM scalar.
    score = jnp.sum(h * w4_ref[...], axis=-1, keepdims=True) + b4_ref[0, 0]
    out_ref[...] = score.astype(out_ref.dtype)


def critic_forward(x, params):
    """x: (batch, INPUT_SIZE) float32 -> (batch, 1) float32 scores."""
    w1, b1, w2, b2, w3, b3, w4, b4 = params
    B = x.shape[0]

    flops = 2 * B * (INPUT_SIZE * HID1 + HID1 * HID2 + HID2 * HID3 + HID3)
    param_bytes = sum(int(np.prod(p.shape)) * p.dtype.itemsize
                      for p in (w1, b1, w2, b2, w3, b3, w4, b4))
    cost = pl.CostEstimate(
        flops=flops, transcendentals=0,
        bytes_accessed=B * INPUT_SIZE * 4 + B * 4 + param_bytes)

    vmem = pl.BlockSpec(memory_space=pltpu.MemorySpace.VMEM)
    smem = pl.BlockSpec(memory_space=pltpu.MemorySpace.SMEM)
    out_shape = jax.ShapeDtypeStruct((B, 1), jnp.float32)

    if B % TM == 0 and B // TM >= 2:
        # Large batch: 1-D grid over batch rows.  Weights/biases use constant
        # index_maps so they stay resident across the whole grid; the parallel
        # batch axis shards rows across both TensorCores on v7x.
        nb = B // TM
        const = lambda shape: pl.BlockSpec(shape, lambda i: (0, 0))
        return pl.pallas_call(
            critic_kernel,
            out_shape=out_shape,
            grid=(nb,),
            in_specs=[
                pl.BlockSpec((TM, INPUT_SIZE), lambda i: (i, 0)),  # x rows
                const((INPUT_SIZE, HID1)), const((1, HID1)),       # w1, b1
                const((HID1, HID2)),       const((1, HID2)),       # w2, b2
                const((HID2, HID3)),       const((1, HID3)),       # w3, b3
                const((1, HID3)),                                  # w4 row
                smem,                                              # b4 scalar
            ],
            out_specs=pl.BlockSpec((TM, 1), lambda i: (i, 0)),
            compiler_params=pltpu.CompilerParams(
                dimension_semantics=("parallel",)),
            cost_estimate=cost,
        )(x, w1, b1, w2, b2, w3, b3, w4, b4)

    # Small / odd batch: single gridless call, everything resident in VMEM.
    # f32 x is passed unpadded (Mosaic pads sublanes internally).
    return pl.pallas_call(
        critic_kernel,
        out_shape=out_shape,
        in_specs=[vmem] * 8 + [smem],
        out_specs=vmem,
        cost_estimate=cost,
    )(x, w1, b1, w2, b2, w3, b3, w4, b4)


def init_params(key):
    """Deterministic init mimicking nn.Linear default U(-1/sqrt(fan_in), +).
    Weights are stored as (in_features, out_features) so the kernel computes
    x @ W + b (identical to PyTorch's x @ W.T + b with W (out, in))."""
    def linear(key, fan_in, fan_out):
        kw, kb = jax.random.split(key)
        bound = 1.0 / np.sqrt(fan_in)
        w = jax.random.uniform(kw, (fan_in, fan_out), jnp.float32, -bound, bound)
        b = jax.random.uniform(kb, (1, fan_out), jnp.float32, -bound, bound)
        return w, b

    k1, k2, k3, k4 = jax.random.split(key, 4)
    w1, b1 = linear(k1, INPUT_SIZE, HID1)
    w2, b2 = linear(k2, HID1, HID2)
    w3, b3 = linear(k3, HID2, HID3)
    w4, b4 = linear(k4, HID3, 1)
    # w1-w3: bf16 MXU operands.  w4: (1, HID3) f32 row for the VPU epilogue.
    # b4: (1, 1) f32 scalar for SMEM.
    return (w1.astype(jnp.bfloat16), b1,
            w2.astype(jnp.bfloat16), b2,
            w3.astype(jnp.bfloat16), b3,
            w4.reshape(1, HID3), b4.reshape(1, 1))


def reference_forward(x, params):
    """Pure-JAX reference with the same bf16 operand rounding as the kernel."""
    w1, b1, w2, b2, w3, b3, w4, b4 = params
    f32 = jnp.float32
    def bf(a):  # round-trip through bf16 to mirror the kernel's MXU operands
        return a.astype(jnp.bfloat16).astype(f32)

    h = _leaky(bf(x) @ w1.astype(f32) + b1)
    h = _leaky(bf(h) @ w2.astype(f32) + b2)
    h = _leaky(bf(h) @ w3.astype(f32) + b3)
    return jnp.sum(h * w4, axis=-1, keepdims=True) + b4[0, 0]


if __name__ == "__main__":
    key = jax.random.PRNGKey(0)
    k_x, k_big, k_params = jax.random.split(key, 3)
    params = init_params(k_params)

    # Small-shape check (batch=2): single gridless pallas_call, no wrapper ops.
    x = jax.random.uniform(k_x, (BATCH, INPUT_SIZE), jnp.float32)
    out = jax.block_until_ready(critic_forward(x, params))
    assert out.shape == (BATCH, 1)
    ref = reference_forward(x, params)
    np.testing.assert_allclose(np.asarray(out), np.asarray(ref), rtol=1e-3, atol=1e-3)

    # Larger-batch check: exercises the 1-D parallel batch grid that amortizes
    # the launch / weight-DMA cost (and shards across both TCs on v7x).
    xb = jax.random.uniform(k_big, (4 * TM, INPUT_SIZE), jnp.float32)
    outb = jax.block_until_ready(critic_forward(xb, params))
    refb = reference_forward(xb, params)
    np.testing.assert_allclose(np.asarray(outb), np.asarray(refb), rtol=1e-3, atol=1e-3)

    print("KERNEL_OK")
</pallas_src>

<mosaic_0001>
module attributes {stable_mosaic.version = 11 : i64} {
  func.func @critic_kernel(%arg0: memref<2x128xf32, #tpu.memory_space<vmem>>, %arg1: memref<128x128xbf16, #tpu.memory_space<vmem>>, %arg2: memref<1x128xf32, #tpu.memory_space<vmem>>, %arg3: memref<128x256xbf16, #tpu.memory_space<vmem>>, %arg4: memref<1x256xf32, #tpu.memory_space<vmem>>, %arg5: memref<256x128xbf16, #tpu.memory_space<vmem>>, %arg6: memref<1x128xf32, #tpu.memory_space<vmem>>, %arg7: memref<1x128xf32, #tpu.memory_space<vmem>>, %arg8: memref<1x1xf32, #tpu.memory_space<smem>>, %arg9: memref<2x1xf32, #tpu.memory_space<vmem>>) attributes {dimension_semantics = [], scalar_prefetch = 0 : i64, scratch_operands = 0 : i64, tpu.core_type = #tpu.core_type<tc>} {
    %c0 = arith.constant 0 : index
    %c0_0 = arith.constant 0 : index
    %0 = vector.load %arg0[%c0, %c0_0] : memref<2x128xf32, #tpu.memory_space<vmem>>, vector<2x128xf32>
    %1 = arith.truncf %0 : vector<2x128xf32> to vector<2x128xbf16>
    %c0_1 = arith.constant 0 : index
    %c0_2 = arith.constant 0 : index
    %2 = vector.load %arg1[%c0_1, %c0_2] : memref<128x128xbf16, #tpu.memory_space<vmem>>, vector<128x128xbf16>
    %cst = arith.constant dense<0.000000e+00> : vector<2x128xf32>
    %3 = tpu.matmul %1, %2, %cst {dimension_numbers = #tpu.dot_dimension_numbers<[1], [0], [0], [1], [0, 0, 1, 1], [], []>} : vector<2x128xbf16>, vector<128x128xbf16>, vector<2x128xf32> -> vector<2x128xf32>
    %c0_3 = arith.constant 0 : index
    %c0_4 = arith.constant 0 : index
    %4 = vector.load %arg2[%c0_3, %c0_4] : memref<1x128xf32, #tpu.memory_space<vmem>>, vector<1x128xf32>
    %5 = vector.broadcast %4 : vector<1x128xf32> to vector<2x128xf32>
    %6 = arith.addf %3, %5 : vector<2x128xf32>
    %cst_5 = arith.constant 0.000000e+00 : f32
    %7 = vector.broadcast %cst_5 : f32 to vector<2x128xf32>
    %8 = arith.cmpf ogt, %6, %7 : vector<2x128xf32>
    %cst_6 = arith.constant 2.000000e-01 : f32
    %9 = vector.broadcast %cst_6 : f32 to vector<2x128xf32>
    %10 = arith.mulf %9, %6 : vector<2x128xf32>
    %11 = arith.select %8, %6, %10 : vector<2x128xi1>, vector<2x128xf32>
    %12 = arith.truncf %11 : vector<2x128xf32> to vector<2x128xbf16>
    %c0_7 = arith.constant 0 : index
    %c0_8 = arith.constant 0 : index
    %13 = vector.load %arg3[%c0_7, %c0_8] : memref<128x256xbf16, #tpu.memory_space<vmem>>, vector<128x256xbf16>
    %cst_9 = arith.constant dense<0.000000e+00> : vector<2x256xf32>
    %14 = tpu.matmul %12, %13, %cst_9 {dimension_numbers = #tpu.dot_dimension_numbers<[1], [0], [0], [1], [0, 0, 1, 1], [], []>} : vector<2x128xbf16>, vector<128x256xbf16>, vector<2x256xf32> -> vector<2x256xf32>
    %c0_10 = arith.constant 0 : index
    %c0_11 = arith.constant 0 : index
    %15 = vector.load %arg4[%c0_10, %c0_11] : memref<1x256xf32, #tpu.memory_space<vmem>>, vector<1x256xf32>
    %16 = vector.broadcast %15 : vector<1x256xf32> to vector<2x256xf32>
    %17 = arith.addf %14, %16 : vector<2x256xf32>
    %cst_12 = arith.constant 0.000000e+00 : f32
    %18 = vector.broadcast %cst_12 : f32 to vector<2x256xf32>
    %19 = arith.cmpf ogt, %17, %18 : vector<2x256xf32>
    %cst_13 = arith.constant 2.000000e-01 : f32
    %20 = vector.broadcast %cst_13 : f32 to vector<2x256xf32>
    %21 = arith.mulf %20, %17 : vector<2x256xf32>
    %22 = arith.select %19, %17, %21 : vector<2x256xi1>, vector<2x256xf32>
    %23 = arith.truncf %22 : vector<2x256xf32> to vector<2x256xbf16>
    %c0_14 = arith.constant 0 : index
    %c0_15 = arith.constant 0 : index
    %24 = vector.load %arg5[%c0_14, %c0_15] : memref<256x128xbf16, #tpu.memory_space<vmem>>, vector<256x128xbf16>
    %cst_16 = arith.constant dense<0.000000e+00> : vector<2x128xf32>
    %25 = tpu.matmul %23, %24, %cst_16 {dimension_numbers = #tpu.dot_dimension_numbers<[1], [0], [0], [1], [0, 0, 1, 1], [], []>} : vector<2x256xbf16>, vector<256x128xbf16>, vector<2x128xf32> -> vector<2x128xf32>
    %c0_17 = arith.constant 0 : index
    %c0_18 = arith.constant 0 : index
    %26 = vector.load %arg6[%c0_17, %c0_18] : memref<1x128xf32, #tpu.memory_space<vmem>>, vector<1x128xf32>
    %27 = vector.broadcast %26 : vector<1x128xf32> to vector<2x128xf32>
    %28 = arith.addf %25, %27 : vector<2x128xf32>
    %cst_19 = arith.constant 0.000000e+00 : f32
    %29 = vector.broadcast %cst_19 : f32 to vector<2x128xf32>
    %30 = arith.cmpf ogt, %28, %29 : vector<2x128xf32>
    %cst_20 = arith.constant 2.000000e-01 : f32
    %31 = vector.broadcast %cst_20 : f32 to vector<2x128xf32>
    %32 = arith.mulf %31, %28 : vector<2x128xf32>
    %33 = arith.select %30, %28, %32 : vector<2x128xi1>, vector<2x128xf32>
    %c0_21 = arith.constant 0 : index
    %c0_22 = arith.constant 0 : index
    %34 = vector.load %arg7[%c0_21, %c0_22] : memref<1x128xf32, #tpu.memory_space<vmem>>, vector<1x128xf32>
    %35 = vector.broadcast %34 : vector<1x128xf32> to vector<2x128xf32>
    %36 = arith.mulf %33, %35 : vector<2x128xf32>
    %cst_23 = arith.constant dense<0.000000e+00> : vector<2xf32>
    %37 = vector.multi_reduction <add>, %36, %cst_23 [1] : vector<2x128xf32> to vector<2xf32>
    %38 = vector.shape_cast %37 : vector<2xf32> to vector<2x1xf32>
    %c0_24 = arith.constant 0 : index
    %c0_25 = arith.constant 0 : index
    %39 = memref.load %arg8[%c0_24, %c0_25] : memref<1x1xf32, #tpu.memory_space<smem>>
    %40 = vector.broadcast %39 : f32 to vector<2x1xf32>
    %41 = arith.addf %38, %40 : vector<2x1xf32>
    %c0_26 = arith.constant 0 : index
    %c0_27 = arith.constant 0 : index
    %42 = vector.load %arg9[%c0_26, %c0_27] : memref<2x1xf32, #tpu.memory_space<vmem>>, vector<2x1xf32>
    tpu.vector_store %arg9[%c0_26, %c0_27], %41 {strides = array<i32>} : memref<2x1xf32, #tpu.memory_space<vmem>>, vector<2x1xf32>,
    return
  }
}

</mosaic_0001>

<llo_original>
// kernel: tpu_custom_call.1
$region0: #{tpu_custom_call.1}
  #allocation0 [shape = 'u32[]', space=smem, size = 0x4, offset = 0x4, fixed_abs, tag = 'smem constant byte address 0x4 - core index']
  #allocation1 [shape = 'u32[144,128]{1,0:T(1,128)}', space=vmem, size = 0x12000, scoped, tag = 'internal scratch']
  #allocation2 [shape = 'f32[1,1]{1,0:T(1,128)S(6)}', space=smem, size = 0x200, scoped, tag = 'scoped memory for tpu_custom_call.1']
  %s0 = inlined_call_operand.vmem [shape: f32[2,128], index: 0, kind: input, shape index: {}]
  %s1 = inlined_call_operand.hbm [shape: bf16[128,128], index: 1, kind: input, shape index: {}]
  %s2 = inlined_call_operand.vmem [shape: f32[1,128], index: 2, kind: input, shape index: {}]
  %s3 = inlined_call_operand.hbm [shape: bf16[128,256], index: 3, kind: input, shape index: {}]
  %s4 = inlined_call_operand.vmem [shape: f32[1,256], index: 4, kind: input, shape index: {}]
  %s5 = inlined_call_operand.hbm [shape: bf16[256,128], index: 5, kind: input, shape index: {}]
  %s6 = inlined_call_operand.vmem [shape: f32[1,128], index: 6, kind: input, shape index: {}]
  %s7 = inlined_call_operand.vmem [shape: f32[1,128], index: 7, kind: input, shape index: {}]
  %s8 = inlined_call_operand.<no memory space> [shape: f32[1,1], index: 8, kind: input, shape index: {}]
  %s9 = inlined_call_operand.vmem [shape: f32[2,1], index: 9, kind: output, shape index: {}]
  %s10 = sld [smem:[#allocation0]]
  $region58: #{tpu_custom_call.1} parent=0
    _
  %s12 = ssub.s32 1, %s10
  %s13 = scalar_select 0, %s12, %s10
  %14 = sst [smem:[#allocation2]] %s8
  $region1: #{tpu_custom_call.1} parent=0
    #allocation3 [shape = 'u8[32768]{0}', space=vmem, size = 0x8000, scoped, tag = 'input window, operand 1, single buffered']
    #allocation4 [shape = 's32[1]{0}', space=sflag, size = 0x4, scoped, tag = 'scoped memory for tpu_custom_call.1']
    #allocation5 [shape = 'u8[65536]{0}', space=vmem, size = 0x10000, scoped, tag = 'input window, operand 3, single buffered']
    #allocation6 [shape = 's32[1]{0}', space=sflag, size = 0x4, scoped, tag = 'scoped memory for tpu_custom_call.1']
    #allocation7 [shape = 'u8[65536]{0}', space=vmem, size = 0x10000, scoped, tag = 'input window, operand 5, single buffered']
    %15 = vsyncpa [#allocation4], 0
    %16 = vsyncpa [#allocation6], 0
    // Predicated region
    $region2: #{tpu_custom_call.1} parent=1 // pred_check
      _
    $region3: #{tpu_custom_call.1} parent=1 // pred_check_branch
      %18 = sbr.rel (0) target = $region5
    $region4: #{tpu_custom_call.1} parent=1 // pred_region
      _
    $region5: #{tpu_custom_call.1} parent=1 // pred_fallthru
      _
    // Predicated region
    $region6: #{tpu_custom_call.1} parent=1 // pred_check
      _
    $region7: #{tpu_custom_call.1} parent=1 // pred_check_branch
      %20 = sbr.rel (0) target = $region9
    $region8: #{tpu_custom_call.1} parent=1 // pred_region
      %s22 = ssub.s32 1024, 1024
      %23 = vsyncadd [#allocation4], %s22
      %s24 = sshll.u32 [#allocation3], 4
      %s25 = int_to_ptr.vmem [resolvable:$true] %s24
      %30 = dma.hbm_to_vmem [thread:$0]  %s1, 1024, %s25, [#allocation4], 64, 64, 4
    $region9: #{tpu_custom_call.1} parent=1 // pred_fallthru
      _
    // Predicated region
    $region10: #{tpu_custom_call.1} parent=1 // pred_check
      _
    $region11: #{tpu_custom_call.1} parent=1 // pred_check_branch
      %32 = sbr.rel (0) target = $region13
    $region12: #{tpu_custom_call.1} parent=1 // pred_region
      _
    $region13: #{tpu_custom_call.1} parent=1 // pred_fallthru
      _
    // Predicated region
    $region14: #{tpu_custom_call.1} parent=1 // pred_check
      _
    $region15: #{tpu_custom_call.1} parent=1 // pred_check_branch
      %34 = sbr.rel (0) target = $region17
    $region16: #{tpu_custom_call.1} parent=1 // pred_region
      %s36 = ssub.s32 2048, 2048
      %37 = vsyncadd [#allocation6], %s36
      %s38 = sshll.u32 [#allocation5], 4
      %s39 = int_to_ptr.vmem [resolvable:$true] %s38
      %44 = dma.hbm_to_vmem [thread:$0]  %s3, 2048, %s39, [#allocation6], 128, 128, 8
    $region17: #{tpu_custom_call.1} parent=1 // pred_fallthru
      _
    // Predicated region
    $region18: #{tpu_custom_call.1} parent=1 // pred_check
      _
    $region19: #{tpu_custom_call.1} parent=1 // pred_check_branch
      %46 = sbr.rel (0) target = $region21
    $region20: #{tpu_custom_call.1} parent=1 // pred_region
      _
    $region21: #{tpu_custom_call.1} parent=1 // pred_fallthru
      _
    // Predicated region
    $region22: #{tpu_custom_call.1} parent=1 // pred_check
      _
    $region23: #{tpu_custom_call.1} parent=1 // pred_check_branch
      %48 = sbr.rel (0) target = $region25
    $region24: #{tpu_custom_call.1} parent=1 // pred_region
      %s50 = ssub.s32 2048, 2048
      %51 = vsyncadd [#allocation6], %s50
      %s52 = sshll.u32 [#allocation7], 4
      %s53 = int_to_ptr.vmem [resolvable:$true] %s52
      %58 = dma.hbm_to_vmem [thread:$0]  %s5, 2048, %s53, [#allocation6], 64, 64, 4
    $region25: #{tpu_custom_call.1} parent=1 // pred_fallthru
      _
    // Predicated region
    $region26: #{tpu_custom_call.1} parent=1 // pred_check
      _
    $region27: #{tpu_custom_call.1} parent=1 // pred_check_branch
      %60 = sbr.rel (0) target = $region29
    $region28: #{tpu_custom_call.1} parent=1 // pred_region
      _
    $region29: #{tpu_custom_call.1} parent=1 // pred_fallthru
      _
    // Predicated region
    $region30: #{tpu_custom_call.1} parent=1 // pred_check
      _
    $region31: #{tpu_custom_call.1} parent=1 // pred_check_branch
      %62 = sbr.rel (0) target = $region33
    $region32: #{tpu_custom_call.1} parent=1 // pred_region
      _
    $region33: #{tpu_custom_call.1} parent=1 // pred_fallthru
      _
    // Predicated region
    $region34: #{tpu_custom_call.1} parent=1 // pred_check
      _
    $region35: #{tpu_custom_call.1} parent=1 // pred_check_branch
      %64 = sbr.rel (0) target = $region37
    $region36: #{tpu_custom_call.1} parent=1 // pred_region
      _
    $region37: #{tpu_custom_call.1} parent=1 // pred_fallthru
      _
    // Predicated region
    $region38: #{tpu_custom_call.1} parent=1 // pred_check
      _
    $region39: #{tpu_custom_call.1} parent=1 // pred_check_branch
      %66 = sbr.rel (0) target = $region41
    $region40: #{tpu_custom_call.1} parent=1 // pred_region
      %67 = dma.done [#allocation4], 1024
    $region41: #{tpu_custom_call.1} parent=1 // pred_fallthru
      _
    // Predicated region
    $region42: #{tpu_custom_call.1} parent=1 // pred_check
      _
    $region43: #{tpu_custom_call.1} parent=1 // pred_check_branch
      %69 = sbr.rel (0) target = $region45
    $region44: #{tpu_custom_call.1} parent=1 // pred_region
      %70 = dma.done [#allocation6], 2048
    $region45: #{tpu_custom_call.1} parent=1 // pred_fallthru
      _
    // Predicated region
    $region46: #{tpu_custom_call.1} parent=1 // pred_check
      _
    $region47: #{tpu_custom_call.1} parent=1 // pred_check_branch
      %72 = sbr.rel (0) target = $region49
    $region48: #{tpu_custom_call.1} parent=1 // pred_region
      %73 = dma.done [#allocation6], 2048
    $region49: #{tpu_custom_call.1} parent=1 // pred_fallthru
      _
    %v75 = vld [vmem:[%s0] sm:$0x3]
    %v76 = vpack.c.bf16 %v75, %v75
    %v77 = vld [vmem:[#allocation3] sm:$0xf]
    %v78 = vld [vmem:[#allocation3 + $0x4] sm:$0xf]
    %v79 = vld [vmem:[#allocation3 + $0x8] sm:$0xf]
    %v80 = vld [vmem:[#allocation3 + $0xc] sm:$0xf]
    %v81 = vld [vmem:[#allocation3 + $0x10] sm:$0xf]
    %v82 = vld [vmem:[#allocation3 + $0x14] sm:$0xf]
    %v83 = vld [vmem:[#allocation3 + $0x18] sm:$0xf]
    %v84 = vld [vmem:[#allocation3 + $0x1c] sm:$0xf]
    %v85 = vld [vmem:[#allocation3 + $0x20] sm:$0xf]
    %v86 = vld [vmem:[#allocation3 + $0x24] sm:$0xf]
    %v87 = vld [vmem:[#allocation3 + $0x28] sm:$0xf]
    %v88 = vld [vmem:[#allocation3 + $0x2c] sm:$0xf]
    %v89 = vld [vmem:[#allocation3 + $0x30] sm:$0xf]
    %v90 = vld [vmem:[#allocation3 + $0x34] sm:$0xf]
    %v91 = vld [vmem:[#allocation3 + $0x38] sm:$0xf]
    %v92 = vld [vmem:[#allocation3 + $0x3c] sm:$0xf]
    %v93 = vld [vmem:[%s2] sm:$0x1]
    %v95 = vlaneseq
    %v96 = vshrl.u32 %v95, 7
    %v97 = vsub.s32 0, %v96
    %v98 = vrot.slane %v93, %v97
    %v116 = vunpack.c.l.b16 %v77
    %v117 = vunpack.c.l.b16 %v78
    %v118 = vunpack.c.l.b16 %v79
    %v119 = vunpack.c.l.b16 %v80
    %v120 = vunpack.c.l.b16 %v81
    %v121 = vunpack.c.l.b16 %v82
    %v122 = vunpack.c.l.b16 %v83
    %v123 = vunpack.c.l.b16 %v84
    %v124 = vunpack.c.l.b16 %v85
    %v125 = vunpack.c.l.b16 %v86
    %v126 = vunpack.c.l.b16 %v87
    %v127 = vunpack.c.l.b16 %v88
    %v128 = vunpack.c.l.b16 %v89
    %v129 = vunpack.c.l.b16 %v90
    %v130 = vunpack.c.l.b16 %v91
    %v131 = vunpack.c.l.b16 %v92
    %v132 = vpack.c.b16 %v117, %v116
    %v133 = vpack.c.b16 %v119, %v118
    %v134 = vpack.c.b16 %v121, %v120
    %v135 = vpack.c.b16 %v123, %v122
    %v136 = vpack.c.b16 %v125, %v124
    %v137 = vpack.c.b16 %v127, %v126
    %v138 = vpack.c.b16 %v129, %v128
    %v139 = vpack.c.b16 %v131, %v130
    %148 = vmatprep.subr.bf16.mxu0 0
    %149 = vmatpush1.bf16.msra.mxu0 %v132
    %150 = vmatprep.subr.bf16.mxu0 0
    %151 = vmatpush1.bf16.msra.mxu0 %v133
    %152 = vmatprep.subr.bf16.mxu0 0
    %153 = vmatpush1.bf16.msra.mxu0 %v134
    %154 = vmatprep.subr.bf16.mxu0 0
    %155 = vmatpush1.bf16.msra.mxu0 %v135
    %156 = vmatprep.subr.bf16.mxu0 0
    %157 = vmatpush1.bf16.msra.mxu0 %v136
    %158 = vmatprep.subr.bf16.mxu0 0
    %159 = vmatpush1.bf16.msra.mxu0 %v137
    %160 = vmatprep.subr.bf16.mxu0 0
    %161 = vmatpush1.bf16.msra.mxu0 %v138
    %162 = vmatprep.subr.bf16.mxu0 0
    %163 = vmatpush1.bf16.msra.mxu0 %v139
    %164 = vmatprep.subr.bf16.mxu0 0
    %165 = vmatpush1.bf16.msra.mxu0 0
    %166 = vmatprep.subr.bf16.mxu0 0
    %167 = vmatpush1.bf16.msra.mxu0 0
    %168 = vmatprep.subr.bf16.mxu0 0
    %169 = vmatpush1.bf16.msra.mxu0 0
    %170 = vmatprep.subr.bf16.mxu0 0
    %171 = vmatpush1.bf16.msra.mxu0 0
    %172 = vmatprep.subr.bf16.mxu0 0
    %173 = vmatpush1.bf16.msra.mxu0 0
    %174 = vmatprep.subr.bf16.mxu0 0
    %175 = vmatpush1.bf16.msra.mxu0 0
    %176 = vmatprep.subr.bf16.mxu0 0
    %177 = vmatpush1.bf16.msra.mxu0 0
    %178 = vmatprep.subr.bf16.mxu0 0
    %179 = vmatpush1.bf16.msra.mxu0 0
    %180 = vmatprep.mubr.bf16.mxu0 0
    %181 = vmatmul.mubr.bf16.gmra.mrb[0].mxu0 %v76
    %v182 = vpop.f32.mrb[0].mxu0
    %v183 = vadd.f32 %v98, %v182
    %v184 = vpop.f32.mrb[0].mxu0
    %v185 = vpop.f32.mrb[0].mxu0
    %v186 = vpop.f32.mrb[0].mxu0
    %187 = vdwg.mxu0
    %vm188 = vcmp.gt.f32.partialorder %v183, 0.0
    %v189 = vmul.f32 %v183, 0.2
    %v190 = vsel %vm188, %v183, %v189
    %v191 = vpack.c.bf16 %v190, %v190
    %v192 = vld [vmem:[#allocation5] sm:$0xff]
    %v193 = vld [vmem:[#allocation5 + $0x8] sm:$0xff]
    %v194 = vld [vmem:[#allocation5 + $0x10] sm:$0xff]
    %v195 = vld [vmem:[#allocation5 + $0x18] sm:$0xff]
    %v196 = vld [vmem:[#allocation5 + $0x20] sm:$0xff]
    %v197 = vld [vmem:[#allocation5 + $0x28] sm:$0xff]
    %v198 = vld [vmem:[#allocation5 + $0x30] sm:$0xff]
    %v199 = vld [vmem:[#allocation5 + $0x38] sm:$0xff]
    %v200 = vld [vmem:[#allocation5 + $0x40] sm:$0xff]
    %v201 = vld [vmem:[#allocation5 + $0x48] sm:$0xff]
    %v202 = vld [vmem:[#allocation5 + $0x50] sm:$0xff]
    %v203 = vld [vmem:[#allocation5 + $0x58] sm:$0xff]
    %v204 = vld [vmem:[#allocation5 + $0x60] sm:$0xff]
    %v205 = vld [vmem:[#allocation5 + $0x68] sm:$0xff]
    %v206 = vld [vmem:[#allocation5 + $0x70] sm:$0xff]
    %v207 = vld [vmem:[#allocation5 + $0x78] sm:$0xff]
    %v208 = vld [vmem:[%s4] sm:$0x3]
    %v210 = vlaneseq
    %v211 = vshrl.u32 %v210, 7
    %v212 = vsub.s32 0, %v211
    %v213 = vrot.slane %v208, %v212
    %v214 = vlaneseq
    %v215 = vshrl.u32 %v214, 7
    %v216 = vsub.s32 1, %v215
    %v217 = vrot.slane %v208, %v216
    %v236 = vunpack.c.l.b16 %v192
    %v237 = vunpack.c.h.b16 %v192
    %v238 = vunpack.c.l.b16 %v193
    %v239 = vunpack.c.h.b16 %v193
    %v240 = vunpack.c.l.b16 %v194
    %v241 = vunpack.c.h.b16 %v194
    %v242 = vunpack.c.l.b16 %v195
    %v243 = vunpack.c.h.b16 %v195
    %v244 = vunpack.c.l.b16 %v196
    %v245 = vunpack.c.h.b16 %v196
    %v246 = vunpack.c.l.b16 %v197
    %v247 = vunpack.c.h.b16 %v197
    %v248 = vunpack.c.l.b16 %v198
    %v249 = vunpack.c.h.b16 %v198
    %v250 = vunpack.c.l.b16 %v199
    %v251 = vunpack.c.h.b16 %v199
    %v252 = vunpack.c.l.b16 %v200
    %v253 = vunpack.c.h.b16 %v200
    %v254 = vunpack.c.l.b16 %v201
    %v255 = vunpack.c.h.b16 %v201
    %v256 = vunpack.c.l.b16 %v202
    %v257 = vunpack.c.h.b16 %v202
    %v258 = vunpack.c.l.b16 %v203
    %v259 = vunpack.c.h.b16 %v203
    %v260 = vunpack.c.l.b16 %v204
    %v261 = vunpack.c.h.b16 %v204
    %v262 = vunpack.c.l.b16 %v205
    %v263 = vunpack.c.h.b16 %v205
    %v264 = vunpack.c.l.b16 %v206
    %v265 = vunpack.c.h.b16 %v206
    %v266 = vunpack.c.l.b16 %v207
    %v267 = vunpack.c.h.b16 %v207
    %v268 = vpack.c.b16 %v238, %v236
    %v269 = vpack.c.b16 %v239, %v237
    %v270 = vpack.c.b16 %v242, %v240
    %v271 = vpack.c.b16 %v243, %v241
    %v272 = vpack.c.b16 %v246, %v244
    %v273 = vpack.c.b16 %v247, %v245
    %v274 = vpack.c.b16 %v250, %v248
    %v275 = vpack.c.b16 %v251, %v249
    %v276 = vpack.c.b16 %v254, %v252
    %v277 = vpack.c.b16 %v255, %v253
    %v278 = vpack.c.b16 %v258, %v256
    %v279 = vpack.c.b16 %v259, %v257
    %v280 = vpack.c.b16 %v262, %v260
    %v281 = vpack.c.b16 %v263, %v261
    %v282 = vpack.c.b16 %v266, %v264
    %v283 = vpack.c.b16 %v267, %v265
    %300 = vmatprep.subr.bf16.mxu0 %v269
    %301 = vmatpush1.bf16.msra.mxu0 %v268
    %302 = vmatprep.subr.bf16.mxu0 %v271
    %303 = vmatpush1.bf16.msra.mxu0 %v270
    %304 = vmatprep.subr.bf16.mxu0 %v273
    %305 = vmatpush1.bf16.msra.mxu0 %v272
    %306 = vmatprep.subr.bf16.mxu0 %v275
    %307 = vmatpush1.bf16.msra.mxu0 %v274
    %308 = vmatprep.subr.bf16.mxu0 %v277
    %309 = vmatpush1.bf16.msra.mxu0 %v276
    %310 = vmatprep.subr.bf16.mxu0 %v279
    %311 = vmatpush1.bf16.msra.mxu0 %v278
    %312 = vmatprep.subr.bf16.mxu0 %v281
    %313 = vmatpush1.bf16.msra.mxu0 %v280
    %314 = vmatprep.subr.bf16.mxu0 %v283
    %315 = vmatpush1.bf16.msra.mxu0 %v282
    %316 = vmatprep.subr.bf16.mxu0 0
    %317 = vmatpush1.bf16.msra.mxu0 0
    %318 = vmatprep.subr.bf16.mxu0 0
    %319 = vmatpush1.bf16.msra.mxu0 0
    %320 = vmatprep.subr.bf16.mxu0 0
    %321 = vmatpush1.bf16.msra.mxu0 0
    %322 = vmatprep.subr.bf16.mxu0 0
    %323 = vmatpush1.bf16.msra.mxu0 0
    %324 = vmatprep.subr.bf16.mxu0 0
    %325 = vmatpush1.bf16.msra.mxu0 0
    %326 = vmatprep.subr.bf16.mxu0 0
    %327 = vmatpush1.bf16.msra.mxu0 0
    %328 = vmatprep.subr.bf16.mxu0 0
    %329 = vmatpush1.bf16.msra.mxu0 0
    %330 = vmatprep.subr.bf16.mxu0 0
    %331 = vmatpush1.bf16.msra.mxu0 0
    %332 = vmatprep.mubr.bf16.mxu0 0
    %333 = vmatmul.mubr.bf16.gmra.mrb[0].mxu0 %v191
    %v334 = vpop.f32.mrb[0].mxu0
    %v335 = vadd.f32 %v213, %v334
    %v336 = vpop.f32.mrb[0].mxu0
    %v337 = vadd.f32 %v217, %v336
    %v338 = vpop.f32.mrb[0].mxu0
    %v339 = vpop.f32.mrb[0].mxu0
    %340 = vdwg.mxu0
    %vm341 = vcmp.gt.f32.partialorder %v335, 0.0
    %vm342 = vcmp.gt.f32.partialorder %v337, 0.0
    %v343 = vmul.f32 %v335, 0.2
    %v344 = vmul.f32 %v337, 0.2
    %v345 = vsel %vm341, %v335, %v343
    %v346 = vsel %vm342, %v337, %v344
    %v347 = vpack.c.bf16 %v345, %v345
    %v348 = vpack.c.bf16 %v346, %v346
    %v349 = vld [vmem:[#allocation7] sm:$0xf]
    %v350 = vld [vmem:[#allocation7 + $0x4] sm:$0xf]
    %v351 = vld [vmem:[#allocation7 + $0x8] sm:$0xf]
    %v352 = vld [vmem:[#allocation7 + $0xc] sm:$0xf]
    %v353 = vld [vmem:[#allocation7 + $0x10] sm:$0xf]
    %v354 = vld [vmem:[#allocation7 + $0x14] sm:$0xf]
    %v355 = vld [vmem:[#allocation7 + $0x18] sm:$0xf]
    %v356 = vld [vmem:[#allocation7 + $0x1c] sm:$0xf]
    %v357 = vld [vmem:[#allocation7 + $0x20] sm:$0xf]
    %v358 = vld [vmem:[#allocation7 + $0x24] sm:$0xf]
    %v359 = vld [vmem:[#allocation7 + $0x28] sm:$0xf]
    %v360 = vld [vmem:[#allocation7 + $0x2c] sm:$0xf]
    %v361 = vld [vmem:[#allocation7 + $0x30] sm:$0xf]
    %v362 = vld [vmem:[#allocation7 + $0x34] sm:$0xf]
    %v363 = vld [vmem:[#allocation7 + $0x38] sm:$0xf]
    %v364 = vld [vmem:[#allocation7 + $0x3c] sm:$0xf]
    %v365 = vld [vmem:[#allocation7 + $0x40] sm:$0xf]
    %v366 = vld [vmem:[#allocation7 + $0x44] sm:$0xf]
    %v367 = vld [vmem:[#allocation7 + $0x48] sm:$0xf]
    %v368 = vld [vmem:[#allocation7 + $0x4c] sm:$0xf]
    %v369 = vld [vmem:[#allocation7 + $0x50] sm:$0xf]
    %v370 = vld [vmem:[#allocation7 + $0x54] sm:$0xf]
    %v371 = vld [vmem:[#allocation7 + $0x58] sm:$0xf]
    %v372 = vld [vmem:[#allocation7 + $0x5c] sm:$0xf]
    %v373 = vld [vmem:[#allocation7 + $0x60] sm:$0xf]
    %v374 = vld [vmem:[#allocation7 + $0x64] sm:$0xf]
    %v375 = vld [vmem:[#allocation7 + $0x68] sm:$0xf]
    %v376 = vld [vmem:[#allocation7 + $0x6c] sm:$0xf]
    %v377 = vld [vmem:[#allocation7 + $0x70] sm:$0xf]
    %v378 = vld [vmem:[#allocation7 + $0x74] sm:$0xf]
    %v379 = vld [vmem:[#allocation7 + $0x78] sm:$0xf]
    %v380 = vld [vmem:[#allocation7 + $0x7c] sm:$0xf]
    %v381 = vld [vmem:[%s6] sm:$0x1]
    %v383 = vlaneseq
    %v384 = vshrl.u32 %v383, 7
    %v385 = vsub.s32 0, %v384
    %v386 = vrot.slane %v381, %v385
    %v420 = vunpack.c.l.b16 %v349
    %v421 = vunpack.c.l.b16 %v350
    %v422 = vunpack.c.l.b16 %v351
    %v423 = vunpack.c.l.b16 %v352
    %v424 = vunpack.c.l.b16 %v353
    %v425 = vunpack.c.l.b16 %v354
    %v426 = vunpack.c.l.b16 %v355
    %v427 = vunpack.c.l.b16 %v356
    %v428 = vunpack.c.l.b16 %v357
    %v429 = vunpack.c.l.b16 %v358
    %v430 = vunpack.c.l.b16 %v359
    %v431 = vunpack.c.l.b16 %v360
    %v432 = vunpack.c.l.b16 %v361
    %v433 = vunpack.c.l.b16 %v362
    %v434 = vunpack.c.l.b16 %v363
    %v435 = vunpack.c.l.b16 %v364
    %v436 = vunpack.c.l.b16 %v365
    %v437 = vunpack.c.l.b16 %v366
    %v438 = vunpack.c.l.b16 %v367
    %v439 = vunpack.c.l.b16 %v368
    %v440 = vunpack.c.l.b16 %v369
    %v441 = vunpack.c.l.b16 %v370
    %v442 = vunpack.c.l.b16 %v371
    %v443 = vunpack.c.l.b16 %v372
    %v444 = vunpack.c.l.b16 %v373
    %v445 = vunpack.c.l.b16 %v374
    %v446 = vunpack.c.l.b16 %v375
    %v447 = vunpack.c.l.b16 %v376
    %v448 = vunpack.c.l.b16 %v377
    %v449 = vunpack.c.l.b16 %v378
    %v450 = vunpack.c.l.b16 %v379
    %v451 = vunpack.c.l.b16 %v380
    %v452 = vpack.c.b16 %v421, %v420
    %v453 = vpack.c.b16 %v423, %v422
    %v454 = vpack.c.b16 %v425, %v424
    %v455 = vpack.c.b16 %v427, %v426
    %v456 = vpack.c.b16 %v429, %v428
    %v457 = vpack.c.b16 %v431, %v430
    %v458 = vpack.c.b16 %v433, %v432
    %v459 = vpack.c.b16 %v435, %v434
    %v460 = vpack.c.b16 %v437, %v436
    %v461 = vpack.c.b16 %v439, %v438
    %v462 = vpack.c.b16 %v441, %v440
    %v463 = vpack.c.b16 %v443, %v442
    %v464 = vpack.c.b16 %v445, %v444
    %v465 = vpack.c.b16 %v447, %v446
    %v466 = vpack.c.b16 %v449, %v448
    %v467 = vpack.c.b16 %v451, %v450
    %484 = vmatprep.subr.bf16.mxu0 0
    %485 = vmatpush1.bf16.msra.mxu0 %v452
    %486 = vmatprep.subr.bf16.mxu0 0
    %487 = vmatpush1.bf16.msra.mxu0 %v453
    %488 = vmatprep.subr.bf16.mxu0 0
    %489 = vmatpush1.bf16.msra.mxu0 %v454
    %490 = vmatprep.subr.bf16.mxu0 0
    %491 = vmatpush1.bf16.msra.mxu0 %v455
    %492 = vmatprep.subr.bf16.mxu0 0
    %493 = vmatpush1.bf16.msra.mxu0 %v456
    %494 = vmatprep.subr.bf16.mxu0 0
    %495 = vmatpush1.bf16.msra.mxu0 %v457
    %496 = vmatprep.subr.bf16.mxu0 0
    %497 = vmatpush1.bf16.msra.mxu0 %v458
    %498 = vmatprep.subr.bf16.mxu0 0
    %499 = vmatpush1.bf16.msra.mxu0 %v459
    %500 = vmatprep.subr.bf16.mxu0 0
    %501 = vmatpush1.bf16.msra.mxu0 %v460
    %502 = vmatprep.subr.bf16.mxu0 0
    %503 = vmatpush1.bf16.msra.mxu0 %v461
    %504 = vmatprep.subr.bf16.mxu0 0
    %505 = vmatpush1.bf16.msra.mxu0 %v462
    %506 = vmatprep.subr.bf16.mxu0 0
    %507 = vmatpush1.bf16.msra.mxu0 %v463
    %508 = vmatprep.subr.bf16.mxu0 0
    %509 = vmatpush1.bf16.msra.mxu0 %v464
    %510 = vmatprep.subr.bf16.mxu0 0
    %511 = vmatpush1.bf16.msra.mxu0 %v465
    %512 = vmatprep.subr.bf16.mxu0 0
    %513 = vmatpush1.bf16.msra.mxu0 %v466
    %514 = vmatprep.subr.bf16.mxu0 0
    %515 = vmatpush1.bf16.msra.mxu0 %v467
    %516 = vmatprep.mubr.bf16.mxu0 %v348
    %517 = vmatmul.mubr.bf16.gmra.mrb[0].mxu0 %v347
    %v518 = vpop.f32.mrb[0].mxu0
    %v519 = vadd.f32 %v386, %v518
    %v520 = vpop.f32.mrb[0].mxu0
    %v521 = vpop.f32.mrb[0].mxu0
    %v522 = vpop.f32.mrb[0].mxu0
    %523 = vdwg.mxu0
    %vm524 = vcmp.gt.f32.partialorder %v519, 0.0
    %v525 = vmul.f32 %v519, 0.2
    %v526 = vsel %vm524, %v519, %v525
    %v527 = vld [vmem:[%s7] sm:$0x1]
    %v529 = vlaneseq
    %v530 = vshrl.u32 %v529, 7
    %v531 = vsub.s32 0, %v530
    %v532 = vrot.slane %v527, %v531
    %v534 = vmul.f32 %v526, %v532
    %vm535 = vcmask 1041408
    %v536 = vsel %vm535, %v534, 0.0
    %537 = vadd.xlane.f32.xlu0 %v536
    %v538 = vpop.xlane.xlu0 %537
    %s539 = sld [smem:[#allocation2]]
    %v540 = vstv %s539
    %v541 = vadd.f32 %v538, %v540
    %vm542 = vcmask 1024
    %543 = vst.msk [vmem:[%s9] sm:$0x3] %vm542, %v541
    // Predicated region
    $region50: #{tpu_custom_call.1} parent=1 // pred_check
      _
    $region51: #{tpu_custom_call.1} parent=1 // pred_check_branch
      %545 = sbr.rel (0) target = $region53
    $region52: #{tpu_custom_call.1} parent=1 // pred_region
      _
    $region53: #{tpu_custom_call.1} parent=1 // pred_fallthru
      _
    // Predicated region
    $region54: #{tpu_custom_call.1} parent=1 // pred_check
      _
    $region55: #{tpu_custom_call.1} parent=1 // pred_check_branch
      %547 = sbr.rel (0) target = $region57
    $region56: #{tpu_custom_call.1} parent=1 // pred_region
      _
    $region57: #{tpu_custom_call.1} parent=1 // pred_fallthru
      _
    %548 = vsyncpa [#allocation4], 1
    %549 = vsyncpa [#allocation6], 1

</llo_original>
